<compile_context>
chip_gen: v7x
topology: tpu7x:2x2x1
jax: 0.10.0
libtpu: 0.0.40
codegen_flags: <defaults>
</compile_context>

<pallas_src>
import jax
import jax.numpy as jnp
from jax import lax
from jax.experimental import pallas as pl
from jax.experimental.pallas import tpu as pltpu

EMBED_DIM = 1024     # forced by torch.zeros(1024) / sensor_input.reshape(1,-1)
GNN_HIDDEN = 128     # cfg.gnn_hidden
NUM_BASE = 6         # base KG vertices (small synthetic KG)
NUM_NODES = NUM_BASE + 2   # + sensor node + zero node
BN_EPS = 1e-5

# Packed-operand row layout for `wb` (all 128 lanes wide):
#   rows [0, 128)    : W2
#   rows [128, 256)  : W3
#   rows [256, 264)  : BN pack  (g1, be1, g2, be2, g3, be3, pad, pad)
#   rows [264, 264+rows) : layer-1 base-vertex contribution (rows, 128)
_W2_OFF = 0
_W3_OFF = GNN_HIDDEN
_BN_OFF = 2 * GNN_HIDDEN
_BASE_OFF = 2 * GNN_HIDDEN + 8


def _fused_gcn_kernel(s_ref, w1_ref, g_ref, wb_ref, o_ref):
    """All three GCN layers (conv -> BN(batch stats) -> ELU) fused."""
    rows = o_ref.shape[0]            # B * N
    bsz = s_ref.shape[0]             # B
    inv_n = 1.0 / rows

    bn = wb_ref[_BN_OFF:_BN_OFF + 8, :]          # (8, 128): g1,be1,g2,be2,g3,be3,0,0

    def bn_elu(h, layer):
        # Train-mode BatchNorm1d over all B*N rows (biased variance),
        # two-pass variance for numerical safety; conv bias is omitted
        # upstream because the mean subtraction cancels it exactly.
        mean = jnp.sum(h, axis=0, keepdims=True) * inv_n          # (1, C)
        d = h - mean
        var = jnp.sum(d * d, axis=0, keepdims=True) * inv_n       # (1, C)
        gamma = bn[2 * layer:2 * layer + 1]                       # (1, C)
        beta = bn[2 * layer + 1:2 * layer + 2]                    # (1, C)
        y = d * (gamma * lax.rsqrt(var + BN_EPS)) + beta
        # ELU (alpha = 1); exp(min(y,0)) - 1 lowers cleanly.
        return jnp.where(y > 0.0, y, jnp.exp(jnp.minimum(y, 0.0)) - 1.0)

    # ---- Layer 1: base-vertex contribution was precomputed host-side; only
    # the B sensor rows see the K=1024 contraction.
    uw_s = jnp.dot(s_ref[...], w1_ref[...],
                   preferred_element_type=jnp.float32)            # (B, 128)
    base_contrib = wb_ref[_BASE_OFF:_BASE_OFF + rows, :]          # (rows, 128)
    m1_sensor = g_ref[:, 0:bsz]                                   # (rows, B)
    h = base_contrib + jnp.dot(m1_sensor, uw_s,
                               preferred_element_type=jnp.float32)
    x = bn_elu(h, 0)

    a = g_ref[:, bsz:]               # block-diagonal kron(I_B, A_hat), (rows, rows)

    # ---- Layer 2.
    w2 = wb_ref[_W2_OFF:_W2_OFF + GNN_HIDDEN, :]
    h = jnp.dot(a, jnp.dot(x, w2, preferred_element_type=jnp.float32),
                preferred_element_type=jnp.float32)
    x = bn_elu(h, 1)

    # ---- Layer 3.
    w3 = wb_ref[_W3_OFF:_W3_OFF + GNN_HIDDEN, :]
    h = jnp.dot(a, jnp.dot(x, w3, preferred_element_type=jnp.float32),
                preferred_element_type=jnp.float32)
    o_ref[...] = bn_elu(h, 2)


def build_normalized_adjacency(edge_index, num_nodes):
    """D^-1/2 (A + I) D^-1/2, dense, from a (2, E) int edge_index."""
    src, dst = edge_index[0], edge_index[1]
    adj = jnp.zeros((num_nodes, num_nodes), jnp.float32)
    adj = adj.at[dst, src].set(1.0)
    adj = adj.at[src, dst].set(1.0)          # symmetrize (undirected KG)
    adj = adj + jnp.eye(num_nodes, dtype=jnp.float32)   # self loops
    deg = jnp.sum(adj, axis=1)
    dinv = jnp.where(deg > 0, lax.rsqrt(deg), 0.0)
    return dinv[:, None] * adj * dinv[None, :]


def _build_static_graph(a_hat, batch_size):
    """Block-diagonal adjacency and layer-1 aggregation M1 = A_blk @ P."""
    rows = batch_size * NUM_NODES
    a_blk = jnp.kron(jnp.eye(batch_size, dtype=jnp.float32), a_hat)
    # P maps the (NUM_BASE + B) unique feature rows onto the B*N node stack
    # (base rows + sensor row per batch element; the zero node maps nowhere).
    ridx, cidx = [], []
    for b in range(batch_size):
        for n in range(NUM_BASE):
            ridx.append(b * NUM_NODES + n)
            cidx.append(n)
        ridx.append(b * NUM_NODES + NUM_BASE)
        cidx.append(NUM_BASE + b)
    p = jnp.zeros((rows, NUM_BASE + batch_size), jnp.float32)
    p = p.at[jnp.array(ridx), jnp.array(cidx)].set(1.0)
    m1 = a_blk @ p
    return a_blk, m1


def prepare_kernel_operands(params, a_hat, base_vertices, batch_size):
    """One-time prep of everything that does not depend on sensor_batch.

    Called ONCE per (params, a_hat, batch_size); the per-call forward only
    runs the fused kernel.  Conv biases are dropped here because they are
    exactly cancelled by train-mode BatchNorm's mean subtraction.
    """
    a_blk, m1 = _build_static_graph(a_hat, batch_size)

    w1, _b1, g1, be1 = params["l1"]
    w2, _b2, g2, be2 = params["l2"]
    w3, _b3, g3, be3 = params["l3"]

    # Layer-1 contribution of the fixed base vertices, precomputed offline:
    # 6 of the 8 unique rows of the only K=1024 contraction never enter the
    # kernel.
    base_contrib = m1[:, :NUM_BASE] @ (base_vertices @ w1)      # (rows, 128)

    bn = jnp.stack([g1, be1, g2, be2, g3, be3], axis=0)          # (6, 128)
    bn = jnp.pad(bn, ((0, 2), (0, 0)))                           # (8, 128) aligned

    wb = jnp.concatenate([w2, w3, bn, base_contrib], axis=0)     # (264+rows, 128)
    g = jnp.concatenate([m1[:, NUM_BASE:], a_blk], axis=1)       # (rows, B+rows)
    return {"w1": w1, "wb": wb, "g": g}


@jax.jit
def knowledge_gcn_forward(prep, sensor_batch):
    """Mirrors KnowledgeGCN.forward with a single fused Pallas kernel."""
    B = sensor_batch.shape[0]
    rows = B * NUM_NODES

    out = pl.pallas_call(
        _fused_gcn_kernel,
        out_shape=jax.ShapeDtypeStruct((rows, GNN_HIDDEN), jnp.float32),
        grid_spec=pl.GridSpec(
            grid=(1,),
            in_specs=[
                pl.BlockSpec((B, EMBED_DIM), lambda i: (0, 0)),            # sensor
                pl.BlockSpec((EMBED_DIM, GNN_HIDDEN), lambda i: (0, 0)),   # w1
                pl.BlockSpec((rows, B + rows), lambda i: (0, 0)),          # g
                pl.BlockSpec((_BASE_OFF + rows, GNN_HIDDEN),
                             lambda i: (0, 0)),                            # wb
            ],
            out_specs=pl.BlockSpec((rows, GNN_HIDDEN), lambda i: (0, 0)),
        ),
        compiler_params=pltpu.CompilerParams(
            dimension_semantics=("arbitrary",)),
    )(sensor_batch.reshape(B, EMBED_DIM), prep["w1"], prep["g"], prep["wb"])

    return out.reshape(B, NUM_NODES, GNN_HIDDEN)


def _reference_forward(params, a_hat, base_vertices, sensor_batch):
    """Pure-JAX reference, faithful to the PyTorch module structure."""
    B = sensor_batch.shape[0]
    x = jnp.concatenate(
        [jnp.broadcast_to(base_vertices[None], (B, NUM_BASE, EMBED_DIM)),
         sensor_batch.reshape(B, 1, EMBED_DIM),
         jnp.zeros((B, 1, EMBED_DIM), jnp.float32)], axis=1)
    for layer in ("l1", "l2", "l3"):
        w, b, g, be = params[layer]
        h = jnp.einsum("nm,bmd->bnd", a_hat,
                       jnp.einsum("bnc,cd->bnd", x, w)) + b
        mean = jnp.mean(h, axis=(0, 1), keepdims=True)
        var = jnp.mean((h - mean) ** 2, axis=(0, 1), keepdims=True)
        y = (h - mean) * lax.rsqrt(var + BN_EPS) * g + be
        x = jnp.where(y > 0, y, jnp.exp(jnp.minimum(y, 0.0)) - 1.0)
    return x


def init_params(key):
    """Deterministic parameter init (shapes follow the module __init__)."""
    ks = jax.random.split(key, 6)
    dims = [(EMBED_DIM, GNN_HIDDEN),
            (GNN_HIDDEN, GNN_HIDDEN),
            (GNN_HIDDEN, GNN_HIDDEN)]
    params = {}
    for i, (cin, cout) in enumerate(dims):
        scale = 1.0 / jnp.sqrt(jnp.float32(cin))
        w = jax.random.normal(ks[2 * i], (cin, cout), jnp.float32) * scale
        b = jax.random.normal(ks[2 * i + 1], (cout,), jnp.float32) * 0.01
        gamma = jnp.ones((cout,), jnp.float32)    # BatchNorm1d defaults
        beta = jnp.zeros((cout,), jnp.float32)
        params[f"l{i + 1}"] = (w, b, gamma, beta)
    return params


if __name__ == "__main__":
    key = jax.random.PRNGKey(0)
    k_base, k_sensor, k_param = jax.random.split(key, 3)

    # Fixed knowledge graph: 6 base vertices + sensor node (6) + zero node (7).
    base_vertices = jax.random.normal(k_base, (NUM_BASE, EMBED_DIM), jnp.float32)
    edge_index = jnp.array(
        [[0, 0, 1, 1, 2, 3, 6, 6, 7],
         [1, 2, 3, 4, 5, 5, 0, 3, 6]], dtype=jnp.int32)   # (2, E)
    a_hat = build_normalized_adjacency(edge_index, NUM_NODES)

    # Small batch of sensor inputs; each flattens to embed_dim = 1024.
    B = 2
    sensor_batch = jax.random.normal(k_sensor, (B, EMBED_DIM), jnp.float32)

    params = init_params(k_param)

    # One-time prep (graph structure + parameter packing); the per-call
    # forward is a single pallas_call on prepped arrays.
    prep = prepare_kernel_operands(params, a_hat, base_vertices, B)

    out = knowledge_gcn_forward(prep, sensor_batch)
    out = jax.block_until_ready(out)

    ref = _reference_forward(params, a_hat, base_vertices, sensor_batch)
    assert out.shape == (B, NUM_NODES, GNN_HIDDEN)
    # Tolerance allows for the different (mathematically identical) matmul
    # factorization / bias cancellation in the fused kernel vs. the einsum
    # reference (accumulation-order differences on the K=1024 contraction).
    assert jnp.allclose(out, ref, atol=2e-3, rtol=2e-3)

    print("KERNEL_OK")
</pallas_src>

<mosaic_0001>
module attributes {stable_mosaic.version = 11 : i64} {
  func.func @_fused_gcn_kernel(%arg0: i32, %arg1: memref<2x1024xf32, #tpu.memory_space<vmem>>, %arg2: memref<1024x128xf32, #tpu.memory_space<vmem>>, %arg3: memref<16x18xf32, #tpu.memory_space<vmem>>, %arg4: memref<280x128xf32, #tpu.memory_space<vmem>>, %arg5: memref<16x128xf32, #tpu.memory_space<vmem>>) attributes {dimension_semantics = [#tpu.dimension_semantics<arbitrary>], iteration_bounds = array<i64: 1>, scalar_prefetch = 0 : i64, scratch_operands = 0 : i64, tpu.core_type = #tpu.core_type<tc>, window_params = [{pipeline_mode = #tpu.pipeline_mode<synchronous>, transform_indices = @transform_0, window_bounds = array<i64: 2, 1024>}, {pipeline_mode = #tpu.pipeline_mode<synchronous>, transform_indices = @transform_1, window_bounds = array<i64: 1024, 128>}, {pipeline_mode = #tpu.pipeline_mode<synchronous>, transform_indices = @transform_2, window_bounds = array<i64: 16, 18>}, {pipeline_mode = #tpu.pipeline_mode<synchronous>, transform_indices = @transform_3, window_bounds = array<i64: 280, 128>}, {pipeline_mode = #tpu.pipeline_mode<synchronous>, transform_indices = @transform_4, window_bounds = array<i64: 16, 128>}]} {
    %c256 = arith.constant 256 : index
    %c0 = arith.constant 0 : index
    %0 = vector.load %arg4[%c256, %c0] : memref<280x128xf32, #tpu.memory_space<vmem>>, vector<8x128xf32>
    %c0_0 = arith.constant 0 : index
    %c0_1 = arith.constant 0 : index
    %1 = vector.load %arg1[%c0_0, %c0_1] : memref<2x1024xf32, #tpu.memory_space<vmem>>, vector<2x1024xf32>
    %c0_2 = arith.constant 0 : index
    %c0_3 = arith.constant 0 : index
    %2 = vector.load %arg2[%c0_2, %c0_3] : memref<1024x128xf32, #tpu.memory_space<vmem>>, vector<1024x128xf32>
    %cst = arith.constant dense<0.000000e+00> : vector<2x128xf32>
    %3 = tpu.matmul %1, %2, %cst {dimension_numbers = #tpu.dot_dimension_numbers<[1], [0], [0], [1], [0, 0, 1, 1], [], []>} : vector<2x1024xf32>, vector<1024x128xf32>, vector<2x128xf32> -> vector<2x128xf32>
    %c264 = arith.constant 264 : index
    %c0_4 = arith.constant 0 : index
    %4 = vector.load %arg4[%c264, %c0_4] : memref<280x128xf32, #tpu.memory_space<vmem>>, vector<16x128xf32>
    %c0_5 = arith.constant 0 : index
    %c0_6 = arith.constant 0 : index
    %5 = vector.load %arg3[%c0_5, %c0_6] : memref<16x18xf32, #tpu.memory_space<vmem>>, vector<16x2xf32>
    %cst_7 = arith.constant dense<0.000000e+00> : vector<16x128xf32>
    %6 = tpu.matmul %5, %3, %cst_7 {dimension_numbers = #tpu.dot_dimension_numbers<[1], [0], [0], [1], [0, 0, 1, 1], [], []>} : vector<16x2xf32>, vector<2x128xf32>, vector<16x128xf32> -> vector<16x128xf32>
    %7 = arith.addf %4, %6 : vector<16x128xf32>
    %cst_8 = arith.constant dense<0.000000e+00> : vector<128xf32>
    %8 = vector.multi_reduction <add>, %7, %cst_8 [0] : vector<16x128xf32> to vector<128xf32>
    %9 = vector.shape_cast %8 : vector<128xf32> to vector<1x128xf32>
    %cst_9 = arith.constant 6.250000e-02 : f32
    %10 = vector.broadcast %cst_9 : f32 to vector<1x128xf32>
    %11 = arith.mulf %9, %10 : vector<1x128xf32>
    %12 = vector.broadcast %11 : vector<1x128xf32> to vector<16x128xf32>
    %13 = arith.subf %7, %12 : vector<16x128xf32>
    %14 = arith.mulf %13, %13 : vector<16x128xf32>
    %cst_10 = arith.constant dense<0.000000e+00> : vector<128xf32>
    %15 = vector.multi_reduction <add>, %14, %cst_10 [0] : vector<16x128xf32> to vector<128xf32>
    %16 = vector.shape_cast %15 : vector<128xf32> to vector<1x128xf32>
    %cst_11 = arith.constant 6.250000e-02 : f32
    %17 = vector.broadcast %cst_11 : f32 to vector<1x128xf32>
    %18 = arith.mulf %16, %17 : vector<1x128xf32>
    %19 = vector.extract_strided_slice %0 {offsets = [0, 0], sizes = [1, 128], strides = [1, 1]} : vector<8x128xf32> to vector<1x128xf32>
    %20 = vector.extract_strided_slice %0 {offsets = [1, 0], sizes = [1, 128], strides = [1, 1]} : vector<8x128xf32> to vector<1x128xf32>
    %cst_12 = arith.constant 9.99999974E-6 : f32
    %21 = vector.broadcast %cst_12 : f32 to vector<1x128xf32>
    %22 = arith.addf %18, %21 : vector<1x128xf32>
    %23 = math.rsqrt %22 : vector<1x128xf32>
    %24 = arith.mulf %19, %23 : vector<1x128xf32>
    %25 = vector.broadcast %24 : vector<1x128xf32> to vector<16x128xf32>
    %26 = arith.mulf %13, %25 : vector<16x128xf32>
    %27 = vector.broadcast %20 : vector<1x128xf32> to vector<16x128xf32>
    %28 = arith.addf %26, %27 : vector<16x128xf32>
    %cst_13 = arith.constant 0.000000e+00 : f32
    %29 = vector.broadcast %cst_13 : f32 to vector<16x128xf32>
    %30 = arith.cmpf ogt, %28, %29 : vector<16x128xf32>
    %cst_14 = arith.constant 0.000000e+00 : f32
    %31 = vector.broadcast %cst_14 : f32 to vector<16x128xf32>
    %32 = arith.minimumf %28, %31 : vector<16x128xf32>
    %33 = math.exp %32 : vector<16x128xf32>
    %cst_15 = arith.constant 1.000000e+00 : f32
    %34 = vector.broadcast %cst_15 : f32 to vector<16x128xf32>
    %35 = arith.subf %33, %34 : vector<16x128xf32>
    %36 = arith.select %30, %28, %35 : vector<16x128xi1>, vector<16x128xf32>
    %c0_16 = arith.constant 0 : index
    %c2 = arith.constant 2 : index
    %37 = vector.load %arg3[%c0_16, %c2] : memref<16x18xf32, #tpu.memory_space<vmem>>, vector<16x16xf32>
    %c0_17 = arith.constant 0 : index
    %c0_18 = arith.constant 0 : index
    %38 = vector.load %arg4[%c0_17, %c0_18] : memref<280x128xf32, #tpu.memory_space<vmem>>, vector<128x128xf32>
    %cst_19 = arith.constant dense<0.000000e+00> : vector<16x128xf32>
    %39 = tpu.matmul %36, %38, %cst_19 {dimension_numbers = #tpu.dot_dimension_numbers<[1], [0], [0], [1], [0, 0, 1, 1], [], []>} : vector<16x128xf32>, vector<128x128xf32>, vector<16x128xf32> -> vector<16x128xf32>
    %cst_20 = arith.constant dense<0.000000e+00> : vector<16x128xf32>
    %40 = tpu.matmul %37, %39, %cst_20 {dimension_numbers = #tpu.dot_dimension_numbers<[1], [0], [0], [1], [0, 0, 1, 1], [], []>} : vector<16x16xf32>, vector<16x128xf32>, vector<16x128xf32> -> vector<16x128xf32>
    %cst_21 = arith.constant dense<0.000000e+00> : vector<128xf32>
    %41 = vector.multi_reduction <add>, %40, %cst_21 [0] : vector<16x128xf32> to vector<128xf32>
    %42 = vector.shape_cast %41 : vector<128xf32> to vector<1x128xf32>
    %cst_22 = arith.constant 6.250000e-02 : f32
    %43 = vector.broadcast %cst_22 : f32 to vector<1x128xf32>
    %44 = arith.mulf %42, %43 : vector<1x128xf32>
    %45 = vector.broadcast %44 : vector<1x128xf32> to vector<16x128xf32>
    %46 = arith.subf %40, %45 : vector<16x128xf32>
    %47 = arith.mulf %46, %46 : vector<16x128xf32>
    %cst_23 = arith.constant dense<0.000000e+00> : vector<128xf32>
    %48 = vector.multi_reduction <add>, %47, %cst_23 [0] : vector<16x128xf32> to vector<128xf32>
    %49 = vector.shape_cast %48 : vector<128xf32> to vector<1x128xf32>
    %cst_24 = arith.constant 6.250000e-02 : f32
    %50 = vector.broadcast %cst_24 : f32 to vector<1x128xf32>
    %51 = arith.mulf %49, %50 : vector<1x128xf32>
    %52 = vector.extract_strided_slice %0 {offsets = [2, 0], sizes = [1, 128], strides = [1, 1]} : vector<8x128xf32> to vector<1x128xf32>
    %53 = vector.extract_strided_slice %0 {offsets = [3, 0], sizes = [1, 128], strides = [1, 1]} : vector<8x128xf32> to vector<1x128xf32>
    %cst_25 = arith.constant 9.99999974E-6 : f32
    %54 = vector.broadcast %cst_25 : f32 to vector<1x128xf32>
    %55 = arith.addf %51, %54 : vector<1x128xf32>
    %56 = math.rsqrt %55 : vector<1x128xf32>
    %57 = arith.mulf %52, %56 : vector<1x128xf32>
    %58 = vector.broadcast %57 : vector<1x128xf32> to vector<16x128xf32>
    %59 = arith.mulf %46, %58 : vector<16x128xf32>
    %60 = vector.broadcast %53 : vector<1x128xf32> to vector<16x128xf32>
    %61 = arith.addf %59, %60 : vector<16x128xf32>
    %cst_26 = arith.constant 0.000000e+00 : f32
    %62 = vector.broadcast %cst_26 : f32 to vector<16x128xf32>
    %63 = arith.cmpf ogt, %61, %62 : vector<16x128xf32>
    %cst_27 = arith.constant 0.000000e+00 : f32
    %64 = vector.broadcast %cst_27 : f32 to vector<16x128xf32>
    %65 = arith.minimumf %61, %64 : vector<16x128xf32>
    %66 = math.exp %65 : vector<16x128xf32>
    %cst_28 = arith.constant 1.000000e+00 : f32
    %67 = vector.broadcast %cst_28 : f32 to vector<16x128xf32>
    %68 = arith.subf %66, %67 : vector<16x128xf32>
    %69 = arith.select %63, %61, %68 : vector<16x128xi1>, vector<16x128xf32>
    %c128 = arith.constant 128 : index
    %c0_29 = arith.constant 0 : index
    %70 = vector.load %arg4[%c128, %c0_29] : memref<280x128xf32, #tpu.memory_space<vmem>>, vector<128x128xf32>
    %cst_30 = arith.constant dense<0.000000e+00> : vector<16x128xf32>
    %71 = tpu.matmul %69, %70, %cst_30 {dimension_numbers = #tpu.dot_dimension_numbers<[1], [0], [0], [1], [0, 0, 1, 1], [], []>} : vector<16x128xf32>, vector<128x128xf32>, vector<16x128xf32> -> vector<16x128xf32>
    %cst_31 = arith.constant dense<0.000000e+00> : vector<16x128xf32>
    %72 = tpu.matmul %37, %71, %cst_31 {dimension_numbers = #tpu.dot_dimension_numbers<[1], [0], [0], [1], [0, 0, 1, 1], [], []>} : vector<16x16xf32>, vector<16x128xf32>, vector<16x128xf32> -> vector<16x128xf32>
    %cst_32 = arith.constant dense<0.000000e+00> : vector<128xf32>
    %73 = vector.multi_reduction <add>, %72, %cst_32 [0] : vector<16x128xf32> to vector<128xf32>
    %74 = vector.shape_cast %73 : vector<128xf32> to vector<1x128xf32>
    %cst_33 = arith.constant 6.250000e-02 : f32
    %75 = vector.broadcast %cst_33 : f32 to vector<1x128xf32>
    %76 = arith.mulf %74, %75 : vector<1x128xf32>
    %77 = vector.broadcast %76 : vector<1x128xf32> to vector<16x128xf32>
    %78 = arith.subf %72, %77 : vector<16x128xf32>
    %79 = arith.mulf %78, %78 : vector<16x128xf32>
    %cst_34 = arith.constant dense<0.000000e+00> : vector<128xf32>
    %80 = vector.multi_reduction <add>, %79, %cst_34 [0] : vector<16x128xf32> to vector<128xf32>
    %81 = vector.shape_cast %80 : vector<128xf32> to vector<1x128xf32>
    %cst_35 = arith.constant 6.250000e-02 : f32
    %82 = vector.broadcast %cst_35 : f32 to vector<1x128xf32>
    %83 = arith.mulf %81, %82 : vector<1x128xf32>
    %84 = vector.extract_strided_slice %0 {offsets = [4, 0], sizes = [1, 128], strides = [1, 1]} : vector<8x128xf32> to vector<1x128xf32>
    %85 = vector.extract_strided_slice %0 {offsets = [5, 0], sizes = [1, 128], strides = [1, 1]} : vector<8x128xf32> to vector<1x128xf32>
    %cst_36 = arith.constant 9.99999974E-6 : f32
    %86 = vector.broadcast %cst_36 : f32 to vector<1x128xf32>
    %87 = arith.addf %83, %86 : vector<1x128xf32>
    %88 = math.rsqrt %87 : vector<1x128xf32>
    %89 = arith.mulf %84, %88 : vector<1x128xf32>
    %90 = vector.broadcast %89 : vector<1x128xf32> to vector<16x128xf32>
    %91 = arith.mulf %78, %90 : vector<16x128xf32>
    %92 = vector.broadcast %85 : vector<1x128xf32> to vector<16x128xf32>
    %93 = arith.addf %91, %92 : vector<16x128xf32>
    %cst_37 = arith.constant 0.000000e+00 : f32
    %94 = vector.broadcast %cst_37 : f32 to vector<16x128xf32>
    %95 = arith.cmpf ogt, %93, %94 : vector<16x128xf32>
    %cst_38 = arith.constant 0.000000e+00 : f32
    %96 = vector.broadcast %cst_38 : f32 to vector<16x128xf32>
    %97 = arith.minimumf %93, %96 : vector<16x128xf32>
    %98 = math.exp %97 : vector<16x128xf32>
    %cst_39 = arith.constant 1.000000e+00 : f32
    %99 = vector.broadcast %cst_39 : f32 to vector<16x128xf32>
    %100 = arith.subf %98, %99 : vector<16x128xf32>
    %101 = arith.select %95, %93, %100 : vector<16x128xi1>, vector<16x128xf32>
    %c0_40 = arith.constant 0 : index
    %c0_41 = arith.constant 0 : index
    %102 = vector.load %arg5[%c0_40, %c0_41] : memref<16x128xf32, #tpu.memory_space<vmem>>, vector<16x128xf32>
    tpu.vector_store %arg5[%c0_40, %c0_41], %101 {strides = array<i32>} : memref<16x128xf32, #tpu.memory_space<vmem>>, vector<16x128xf32>,
    return
  }
  func.func @transform_0(%arg0: i32) -> (i32, i32) {
    %c0_i32 = arith.constant 0 : i32
    %c0_i32_0 = arith.constant 0 : i32
    %c0_i32_1 = arith.constant 0 : i32
    return %c0_i32, %c0_i32_0 : i32, i32
  }
  func.func @transform_1(%arg0: i32) -> (i32, i32) {
    %c0_i32 = arith.constant 0 : i32
    %c0_i32_0 = arith.constant 0 : i32
    %c0_i32_1 = arith.constant 0 : i32
    return %c0_i32, %c0_i32_0 : i32, i32
  }
  func.func @transform_2(%arg0: i32) -> (i32, i32) {
    %c0_i32 = arith.constant 0 : i32
    %c0_i32_0 = arith.constant 0 : i32
    %c0_i32_1 = arith.constant 0 : i32
    return %c0_i32, %c0_i32_0 : i32, i32
  }
  func.func @transform_3(%arg0: i32) -> (i32, i32) {
    %c0_i32 = arith.constant 0 : i32
    %c0_i32_0 = arith.constant 0 : i32
    %c0_i32_1 = arith.constant 0 : i32
    return %c0_i32, %c0_i32_0 : i32, i32
  }
  func.func @transform_4(%arg0: i32) -> (i32, i32) {
    %c0_i32 = arith.constant 0 : i32
    %c0_i32_0 = arith.constant 0 : i32
    %c0_i32_1 = arith.constant 0 : i32
    return %c0_i32, %c0_i32_0 : i32, i32
  }
}

</mosaic_0001>

<llo_original>
// kernel: knowledge_gcn_forward.1
$region0: #{knowledge_gcn_forward.1}
  #allocation0 [shape = 'u32[]', space=smem, size = 0x4, offset = 0x4, fixed_abs, tag = 'smem constant byte address 0x4 - core index']
  #allocation1 [shape = 'u32[144,128]{1,0:T(1,128)}', space=vmem, size = 0x12000, scoped, tag = 'internal scratch']
  %s0 = inlined_call_operand.hbm [shape: f32[2,1024], index: 0, kind: input, shape index: {}]
  %s1 = inlined_call_operand.hbm [shape: f32[1024,128], index: 1, kind: input, shape index: {}]
  %s2 = inlined_call_operand.hbm [shape: f32[16,18], index: 2, kind: input, shape index: {}]
  %s3 = inlined_call_operand.hbm [shape: f32[280,128], index: 3, kind: input, shape index: {}]
  %s4 = inlined_call_operand.hbm [shape: f32[16,128], index: 4, kind: output, shape index: {}]
  %s5 = sld [smem:[#allocation0]]
  $region42: #{knowledge_gcn_forward.1} parent=0
    _
  %s7 = ssub.s32 1, %s5
  %s8 = scalar_select 0, %s7, %s5
  $region1: #{knowledge_gcn_forward.1} parent=0
    #allocation2 [shape = 'u8[8192]{0}', space=vmem, size = 0x2000, scoped, tag = 'input window, operand 0, single buffered']
    #allocation3 [shape = 's32[1]{0}', space=sflag, size = 0x4, scoped, tag = 'scoped memory for knowledge_gcn_forward.1']
    #allocation4 [shape = 's32[1]{0}', space=sflag, size = 0x4, scoped, tag = 'scoped memory for knowledge_gcn_forward.1']
    #allocation5 [shape = 'u8[524288]{0}', space=vmem, size = 0x80000, scoped, tag = 'input window, operand 1, single buffered']
    #allocation6 [shape = 's32[1]{0}', space=sflag, size = 0x4, scoped, tag = 'scoped memory for knowledge_gcn_forward.1']
    #allocation7 [shape = 'u8[8192]{0}', space=vmem, size = 0x2000, scoped, tag = 'input window, operand 2, single buffered']
    #allocation8 [shape = 'u8[143360]{0}', space=vmem, size = 0x23000, scoped, tag = 'input window, operand 3, single buffered']
    #allocation9 [shape = 's32[1]{0}', space=sflag, size = 0x4, scoped, tag = 'scoped memory for knowledge_gcn_forward.1']
    #allocation10 [shape = 'u8[8192]{0}', space=vmem, size = 0x2000, scoped, tag = 'output window, operand 0, single buffered']
    %9 = vsyncpa [#allocation3], 0
    %10 = vsyncpa [#allocation6], 0
    %11 = vsyncpa [#allocation9], 0
    %12 = vsyncpa [#allocation4], 0
    // Predicated region
    $region2: #{knowledge_gcn_forward.1} parent=1 // pred_check
      _
    $region3: #{knowledge_gcn_forward.1} parent=1 // pred_check_branch
      %14 = sbr.rel (0) target = $region5
    $region4: #{knowledge_gcn_forward.1} parent=1 // pred_region
      %s16 = ssub.s32 256, 256
      %17 = vsyncadd [#allocation3], %s16
      %s19 = sshll.u32 [#allocation2], 4
      %s20 = int_to_ptr.vmem [resolvable:$true] %s19
      %22 = dma.hbm_to_vmem [thread:$0]  %s0, 256, %s20, [#allocation3]
    $region5: #{knowledge_gcn_forward.1} parent=1 // pred_fallthru
      _
    // Predicated region
    $region6: #{knowledge_gcn_forward.1} parent=1 // pred_check
      _
    $region7: #{knowledge_gcn_forward.1} parent=1 // pred_check_branch
      %24 = sbr.rel (0) target = $region9
    $region8: #{knowledge_gcn_forward.1} parent=1 // pred_region
      %s26 = ssub.s32 16384, 16384
      %27 = vsyncadd [#allocation6], %s26
      %s28 = sshll.u32 [#allocation5], 4
      %s29 = int_to_ptr.vmem [resolvable:$true] %s28
      %34 = dma.hbm_to_vmem [thread:$0]  %s1, 16384, %s29, [#allocation6], 128, 128, 8
    $region9: #{knowledge_gcn_forward.1} parent=1 // pred_fallthru
      _
    // Predicated region
    $region10: #{knowledge_gcn_forward.1} parent=1 // pred_check
      _
    $region11: #{knowledge_gcn_forward.1} parent=1 // pred_check_branch
      %36 = sbr.rel (0) target = $region13
    $region12: #{knowledge_gcn_forward.1} parent=1 // pred_region
      %s38 = ssub.s32 256, 256
      %39 = vsyncadd [#allocation6], %s38
      %s40 = sshll.u32 [#allocation7], 4
      %s41 = int_to_ptr.vmem [resolvable:$true] %s40
      %46 = dma.hbm_to_vmem [thread:$0]  %s2, 256, %s41, [#allocation6], 128, 128, 8
    $region13: #{knowledge_gcn_forward.1} parent=1 // pred_fallthru
      _
    // Predicated region
    $region14: #{knowledge_gcn_forward.1} parent=1 // pred_check
      _
    $region15: #{knowledge_gcn_forward.1} parent=1 // pred_check_branch
      %48 = sbr.rel (0) target = $region17
    $region16: #{knowledge_gcn_forward.1} parent=1 // pred_region
      %s50 = ssub.s32 4480, 4480
      %51 = vsyncadd [#allocation9], %s50
      %s52 = sshll.u32 [#allocation8], 4
      %s53 = int_to_ptr.vmem [resolvable:$true] %s52
      %58 = dma.hbm_to_vmem [thread:$0]  %s3, 4480, %s53, [#allocation9], 128, 128, 8
    $region17: #{knowledge_gcn_forward.1} parent=1 // pred_fallthru
      _
    // Predicated region
    $region18: #{knowledge_gcn_forward.1} parent=1 // pred_check
      _
    $region19: #{knowledge_gcn_forward.1} parent=1 // pred_check_branch
      %60 = sbr.rel (0) target = $region21
    $region20: #{knowledge_gcn_forward.1} parent=1 // pred_region
      %61 = dma.done [#allocation3], 256
    $region21: #{knowledge_gcn_forward.1} parent=1 // pred_fallthru
      _
    // Predicated region
    $region22: #{knowledge_gcn_forward.1} parent=1 // pred_check
      _
    $region23: #{knowledge_gcn_forward.1} parent=1 // pred_check_branch
      %63 = sbr.rel (0) target = $region25
    $region24: #{knowledge_gcn_forward.1} parent=1 // pred_region
      %64 = dma.done [#allocation6], 16384
    $region25: #{knowledge_gcn_forward.1} parent=1 // pred_fallthru
      _
    // Predicated region
    $region26: #{knowledge_gcn_forward.1} parent=1 // pred_check
      _
    $region27: #{knowledge_gcn_forward.1} parent=1 // pred_check_branch
      %66 = sbr.rel (0) target = $region29
    $region28: #{knowledge_gcn_forward.1} parent=1 // pred_region
      %67 = dma.done [#allocation6], 256
    $region29: #{knowledge_gcn_forward.1} parent=1 // pred_fallthru
      _
    // Predicated region
    $region30: #{knowledge_gcn_forward.1} parent=1 // pred_check
      _
    $region31: #{knowledge_gcn_forward.1} parent=1 // pred_check_branch
      %69 = sbr.rel (0) target = $region33
    $region32: #{knowledge_gcn_forward.1} parent=1 // pred_region
      %70 = dma.done [#allocation9], 4480
    $region33: #{knowledge_gcn_forward.1} parent=1 // pred_fallthru
      _
    %v71 = vld [vmem:[#allocation8 + $0x100] sm:$0xff]
    %v72 = vld [vmem:[#allocation2] sm:$0xff]
    %v73 = vld [vmem:[#allocation2 + $0x8] sm:$0xff]
    %v74 = vld [vmem:[#allocation5] sm:$0xff]
    %v75 = vld [vmem:[#allocation5 + $0x8] sm:$0xff]
    %v76 = vld [vmem:[#allocation5 + $0x10] sm:$0xff]
    %v77 = vld [vmem:[#allocation5 + $0x18] sm:$0xff]
    %v78 = vld [vmem:[#allocation5 + $0x20] sm:$0xff]
    %v79 = vld [vmem:[#allocation5 + $0x28] sm:$0xff]
    %v80 = vld [vmem:[#allocation5 + $0x30] sm:$0xff]
    %v81 = vld [vmem:[#allocation5 + $0x38] sm:$0xff]
    %v82 = vld [vmem:[#allocation5 + $0x40] sm:$0xff]
    %v83 = vld [vmem:[#allocation5 + $0x48] sm:$0xff]
    %v84 = vld [vmem:[#allocation5 + $0x50] sm:$0xff]
    %v85 = vld [vmem:[#allocation5 + $0x58] sm:$0xff]
    %v86 = vld [vmem:[#allocation5 + $0x60] sm:$0xff]
    %v87 = vld [vmem:[#allocation5 + $0x68] sm:$0xff]
    %v88 = vld [vmem:[#allocation5 + $0x70] sm:$0xff]
    %v89 = vld [vmem:[#allocation5 + $0x78] sm:$0xff]
    %v90 = vld [vmem:[#allocation5 + $0x80] sm:$0xff]
    %v91 = vld [vmem:[#allocation5 + $0x88] sm:$0xff]
    %v92 = vld [vmem:[#allocation5 + $0x90] sm:$0xff]
    %v93 = vld [vmem:[#allocation5 + $0x98] sm:$0xff]
    %v94 = vld [vmem:[#allocation5 + $0xa0] sm:$0xff]
    %v95 = vld [vmem:[#allocation5 + $0xa8] sm:$0xff]
    %v96 = vld [vmem:[#allocation5 + $0xb0] sm:$0xff]
    %v97 = vld [vmem:[#allocation5 + $0xb8] sm:$0xff]
    %v98 = vld [vmem:[#allocation5 + $0xc0] sm:$0xff]
    %v99 = vld [vmem:[#allocation5 + $0xc8] sm:$0xff]
    %v100 = vld [vmem:[#allocation5 + $0xd0] sm:$0xff]
    %v101 = vld [vmem:[#allocation5 + $0xd8] sm:$0xff]
    %v102 = vld [vmem:[#allocation5 + $0xe0] sm:$0xff]
    %v103 = vld [vmem:[#allocation5 + $0xe8] sm:$0xff]
    %v104 = vld [vmem:[#allocation5 + $0xf0] sm:$0xff]
    %v105 = vld [vmem:[#allocation5 + $0xf8] sm:$0xff]
    %v106 = vld [vmem:[#allocation5 + $0x100] sm:$0xff]
    %v107 = vld [vmem:[#allocation5 + $0x108] sm:$0xff]
    %v108 = vld [vmem:[#allocation5 + $0x110] sm:$0xff]
    %v109 = vld [vmem:[#allocation5 + $0x118] sm:$0xff]
    %v110 = vld [vmem:[#allocation5 + $0x120] sm:$0xff]
    %v111 = vld [vmem:[#allocation5 + $0x128] sm:$0xff]
    %v112 = vld [vmem:[#allocation5 + $0x130] sm:$0xff]
    %v113 = vld [vmem:[#allocation5 + $0x138] sm:$0xff]
    %v114 = vld [vmem:[#allocation5 + $0x140] sm:$0xff]
    %v115 = vld [vmem:[#allocation5 + $0x148] sm:$0xff]
    %v116 = vld [vmem:[#allocation5 + $0x150] sm:$0xff]
    %v117 = vld [vmem:[#allocation5 + $0x158] sm:$0xff]
    %v118 = vld [vmem:[#allocation5 + $0x160] sm:$0xff]
    %v119 = vld [vmem:[#allocation5 + $0x168] sm:$0xff]
    %v120 = vld [vmem:[#allocation5 + $0x170] sm:$0xff]
    %v121 = vld [vmem:[#allocation5 + $0x178] sm:$0xff]
    %v122 = vld [vmem:[#allocation5 + $0x180] sm:$0xff]
    %v123 = vld [vmem:[#allocation5 + $0x188] sm:$0xff]
    %v124 = vld [vmem:[#allocation5 + $0x190] sm:$0xff]
    %v125 = vld [vmem:[#allocation5 + $0x198] sm:$0xff]
    %v126 = vld [vmem:[#allocation5 + $0x1a0] sm:$0xff]
    %v127 = vld [vmem:[#allocation5 + $0x1a8] sm:$0xff]
    %v128 = vld [vmem:[#allocation5 + $0x1b0] sm:$0xff]
    %v129 = vld [vmem:[#allocation5 + $0x1b8] sm:$0xff]
    %v130 = vld [vmem:[#allocation5 + $0x1c0] sm:$0xff]
    %v131 = vld [vmem:[#allocation5 + $0x1c8] sm:$0xff]
    %v132 = vld [vmem:[#allocation5 + $0x1d0] sm:$0xff]
    %v133 = vld [vmem:[#allocation5 + $0x1d8] sm:$0xff]
    %v134 = vld [vmem:[#allocation5 + $0x1e0] sm:$0xff]
    %v135 = vld [vmem:[#allocation5 + $0x1e8] sm:$0xff]
    %v136 = vld [vmem:[#allocation5 + $0x1f0] sm:$0xff]
    %v137 = vld [vmem:[#allocation5 + $0x1f8] sm:$0xff]
    %v138 = vld [vmem:[#allocation5 + $0x200] sm:$0xff]
    %v139 = vld [vmem:[#allocation5 + $0x208] sm:$0xff]
    %v140 = vld [vmem:[#allocation5 + $0x210] sm:$0xff]
    %v141 = vld [vmem:[#allocation5 + $0x218] sm:$0xff]
    %v142 = vld [vmem:[#allocation5 + $0x220] sm:$0xff]
    %v143 = vld [vmem:[#allocation5 + $0x228] sm:$0xff]
    %v144 = vld [vmem:[#allocation5 + $0x230] sm:$0xff]
    %v145 = vld [vmem:[#allocation5 + $0x238] sm:$0xff]
    %v146 = vld [vmem:[#allocation5 + $0x240] sm:$0xff]
    %v147 = vld [vmem:[#allocation5 + $0x248] sm:$0xff]
    %v148 = vld [vmem:[#allocation5 + $0x250] sm:$0xff]
    %v149 = vld [vmem:[#allocation5 + $0x258] sm:$0xff]
    %v150 = vld [vmem:[#allocation5 + $0x260] sm:$0xff]
    %v151 = vld [vmem:[#allocation5 + $0x268] sm:$0xff]
    %v152 = vld [vmem:[#allocation5 + $0x270] sm:$0xff]
    %v153 = vld [vmem:[#allocation5 + $0x278] sm:$0xff]
    %v154 = vld [vmem:[#allocation5 + $0x280] sm:$0xff]
    %v155 = vld [vmem:[#allocation5 + $0x288] sm:$0xff]
    %v156 = vld [vmem:[#allocation5 + $0x290] sm:$0xff]
    %v157 = vld [vmem:[#allocation5 + $0x298] sm:$0xff]
    %v158 = vld [vmem:[#allocation5 + $0x2a0] sm:$0xff]
    %v159 = vld [vmem:[#allocation5 + $0x2a8] sm:$0xff]
    %v160 = vld [vmem:[#allocation5 + $0x2b0] sm:$0xff]
    %v161 = vld [vmem:[#allocation5 + $0x2b8] sm:$0xff]
    %v162 = vld [vmem:[#allocation5 + $0x2c0] sm:$0xff]
    %v163 = vld [vmem:[#allocation5 + $0x2c8] sm:$0xff]
    %v164 = vld [vmem:[#allocation5 + $0x2d0] sm:$0xff]
    %v165 = vld [vmem:[#allocation5 + $0x2d8] sm:$0xff]
    %v166 = vld [vmem:[#allocation5 + $0x2e0] sm:$0xff]
    %v167 = vld [vmem:[#allocation5 + $0x2e8] sm:$0xff]
    %v168 = vld [vmem:[#allocation5 + $0x2f0] sm:$0xff]
    %v169 = vld [vmem:[#allocation5 + $0x2f8] sm:$0xff]
    %v170 = vld [vmem:[#allocation5 + $0x300] sm:$0xff]
    %v171 = vld [vmem:[#allocation5 + $0x308] sm:$0xff]
    %v172 = vld [vmem:[#allocation5 + $0x310] sm:$0xff]
    %v173 = vld [vmem:[#allocation5 + $0x318] sm:$0xff]
    %v174 = vld [vmem:[#allocation5 + $0x320] sm:$0xff]
    %v175 = vld [vmem:[#allocation5 + $0x328] sm:$0xff]
    %v176 = vld [vmem:[#allocation5 + $0x330] sm:$0xff]
    %v177 = vld [vmem:[#allocation5 + $0x338] sm:$0xff]
    %v178 = vld [vmem:[#allocation5 + $0x340] sm:$0xff]
    %v179 = vld [vmem:[#allocation5 + $0x348] sm:$0xff]
    %v180 = vld [vmem:[#allocation5 + $0x350] sm:$0xff]
    %v181 = vld [vmem:[#allocation5 + $0x358] sm:$0xff]
    %v182 = vld [vmem:[#allocation5 + $0x360] sm:$0xff]
    %v183 = vld [vmem:[#allocation5 + $0x368] sm:$0xff]
    %v184 = vld [vmem:[#allocation5 + $0x370] sm:$0xff]
    %v185 = vld [vmem:[#allocation5 + $0x378] sm:$0xff]
    %v186 = vld [vmem:[#allocation5 + $0x380] sm:$0xff]
    %v187 = vld [vmem:[#allocation5 + $0x388] sm:$0xff]
    %v188 = vld [vmem:[#allocation5 + $0x390] sm:$0xff]
    %v189 = vld [vmem:[#allocation5 + $0x398] sm:$0xff]
    %v190 = vld [vmem:[#allocation5 + $0x3a0] sm:$0xff]
    %v191 = vld [vmem:[#allocation5 + $0x3a8] sm:$0xff]
    %v192 = vld [vmem:[#allocation5 + $0x3b0] sm:$0xff]
    %v193 = vld [vmem:[#allocation5 + $0x3b8] sm:$0xff]
    %v194 = vld [vmem:[#allocation5 + $0x3c0] sm:$0xff]
    %v195 = vld [vmem:[#allocation5 + $0x3c8] sm:$0xff]
    %v196 = vld [vmem:[#allocation5 + $0x3d0] sm:$0xff]
    %v197 = vld [vmem:[#allocation5 + $0x3d8] sm:$0xff]
    %v198 = vld [vmem:[#allocation5 + $0x3e0] sm:$0xff]
    %v199 = vld [vmem:[#allocation5 + $0x3e8] sm:$0xff]
    %v200 = vld [vmem:[#allocation5 + $0x3f0] sm:$0xff]
    %v201 = vld [vmem:[#allocation5 + $0x3f8] sm:$0xff]
    %v204 = vcombine.high %v72, %v72
    %v206 = vunpack.c.l.s4 1983009808
    %v207 = vunpack.c.0.s8 %v206
    %v208 = vlaneseq
    %v209 = vshrl.u32 %v208, 7
    %v210 = vsub.s32 %v207, %v209
    %v211 = vrot.slane %v72, %v210
    %v213 = vunpack.c.l.s4 1983009808
    %v214 = vunpack.c.0.s8 %v213
    %v215 = vlaneseq
    %v216 = vshrl.u32 %v215, 7
    %v217 = vsub.s32 %v214, %v216
    %v218 = vrot.slane %v204, %v217
    %v219 = vcombine.high %v211, %v211
    %v220 = vcombine.high %v218, %v218
    %v221 = vcombine.high %v73, %v73
    %v223 = vunpack.c.l.s4 1983009808
    %v224 = vunpack.c.0.s8 %v223
    %v225 = vlaneseq
    %v226 = vshrl.u32 %v225, 7
    %v227 = vsub.s32 %v224, %v226
    %v228 = vrot.slane %v73, %v227
    %v230 = vunpack.c.l.s4 1983009808
    %v231 = vunpack.c.0.s8 %v230
    %v232 = vlaneseq
    %v233 = vshrl.u32 %v232, 7
    %v234 = vsub.s32 %v231, %v233
    %v235 = vrot.slane %v221, %v234
    %v236 = vcombine.high %v228, %v228
    %v237 = vcombine.high %v235, %v235
    %246 = vmatprep.subr.mxu0 0.0
    %247 = vmatpush1.msra.mxu0 %v74
    %248 = vmatprep.subr.mxu0 0.0
    %249 = vmatpush1.msra.mxu0 %v75
    %250 = vmatprep.subr.mxu0 0.0
    %251 = vmatpush1.msra.mxu0 %v76
    %252 = vmatprep.subr.mxu0 0.0
    %253 = vmatpush1.msra.mxu0 %v77
    %254 = vmatprep.subr.mxu0 0.0
    %255 = vmatpush1.msra.mxu0 %v78
    %256 = vmatprep.subr.mxu0 0.0
    %257 = vmatpush1.msra.mxu0 %v79
    %258 = vmatprep.subr.mxu0 0.0
    %259 = vmatpush1.msra.mxu0 %v80
    %260 = vmatprep.subr.mxu0 0.0
    %261 = vmatpush1.msra.mxu0 %v81
    %262 = vmatprep.subr.mxu0 0.0
    %263 = vmatpush1.msra.mxu0 %v82
    %264 = vmatprep.subr.mxu0 0.0
    %265 = vmatpush1.msra.mxu0 %v83
    %266 = vmatprep.subr.mxu0 0.0
    %267 = vmatpush1.msra.mxu0 %v84
    %268 = vmatprep.subr.mxu0 0.0
    %269 = vmatpush1.msra.mxu0 %v85
    %270 = vmatprep.subr.mxu0 0.0
    %271 = vmatpush1.msra.mxu0 %v86
    %272 = vmatprep.subr.mxu0 0.0
    %273 = vmatpush1.msra.mxu0 %v87
    %274 = vmatprep.subr.mxu0 0.0
    %275 = vmatpush1.msra.mxu0 %v88
    %276 = vmatprep.subr.mxu0 0.0
    %277 = vmatpush1.msra.mxu0 %v89
    %278 = vmatprep.subr.mxu0 0.0
    %279 = vmatpush1.msra.mxu0 %v90
    %280 = vmatprep.subr.mxu0 0.0
    %281 = vmatpush1.msra.mxu0 %v91
    %282 = vmatprep.subr.mxu0 0.0
    %283 = vmatpush1.msra.mxu0 %v92
    %284 = vmatprep.subr.mxu0 0.0
    %285 = vmatpush1.msra.mxu0 %v93
    %286 = vmatprep.subr.mxu0 0.0
    %287 = vmatpush1.msra.mxu0 %v94
    %288 = vmatprep.subr.mxu0 0.0
    %289 = vmatpush1.msra.mxu0 %v95
    %290 = vmatprep.subr.mxu0 0.0
    %291 = vmatpush1.msra.mxu0 %v96
    %292 = vmatprep.subr.mxu0 0.0
    %293 = vmatpush1.msra.mxu0 %v97
    %294 = vmatprep.subr.mxu0 0.0
    %295 = vmatpush1.msra.mxu0 %v98
    %296 = vmatprep.subr.mxu0 0.0
    %297 = vmatpush1.msra.mxu0 %v99
    %298 = vmatprep.subr.mxu0 0.0
    %299 = vmatpush1.msra.mxu0 %v100
    %300 = vmatprep.subr.mxu0 0.0
    %301 = vmatpush1.msra.mxu0 %v101
    %302 = vmatprep.subr.mxu0 0.0
    %303 = vmatpush1.msra.mxu0 %v102
    %304 = vmatprep.subr.mxu0 0.0
    %305 = vmatpush1.msra.mxu0 %v103
    %306 = vmatprep.subr.mxu0 0.0
    %307 = vmatpush1.msra.mxu0 %v104
    %308 = vmatprep.subr.mxu0 0.0
    %309 = vmatpush1.msra.mxu0 %v105
    %310 = vmatprep.mubr.f32.mxu0 %v219
    %311 = vmatmul.mubr.f32.gmra.mrb[0].mxu0 %v211
    %v312 = vpop.f32.mrb[0].mxu0
    %v313 = vadd.f32 0.0, %v312
    %v314 = vpop.f32.mrb[0].mxu0
    %315 = vdwg.mxu0
    %316 = vmatprep.subr.mxu0 0.0
    %317 = vmatpush1.msra.mxu0 %v106
    %318 = vmatprep.subr.mxu0 0.0
    %319 = vmatpush1.msra.mxu0 %v107
    %320 = vmatprep.subr.mxu0 0.0
    %321 = vmatpush1.msra.mxu0 %v108
    %322 = vmatprep.subr.mxu0 0.0
    %323 = vmatpush1.msra.mxu0 %v109
    %324 = vmatprep.subr.mxu0 0.0
    %325 = vmatpush1.msra.mxu0 %v110
    %326 = vmatprep.subr.mxu0 0.0
    %327 = vmatpush1.msra.mxu0 %v111
    %328 = vmatprep.subr.mxu0 0.0
    %329 = vmatpush1.msra.mxu0 %v112
    %330 = vmatprep.subr.mxu0 0.0
    %331 = vmatpush1.msra.mxu0 %v113
    %332 = vmatprep.subr.mxu0 0.0
    %333 = vmatpush1.msra.mxu0 %v114
    %334 = vmatprep.subr.mxu0 0.0
    %335 = vmatpush1.msra.mxu0 %v115
    %336 = vmatprep.subr.mxu0 0.0
    %337 = vmatpush1.msra.mxu0 %v116
    %338 = vmatprep.subr.mxu0 0.0
    %339 = vmatpush1.msra.mxu0 %v117
    %340 = vmatprep.subr.mxu0 0.0
    %341 = vmatpush1.msra.mxu0 %v118
    %342 = vmatprep.subr.mxu0 0.0
    %343 = vmatpush1.msra.mxu0 %v119
    %344 = vmatprep.subr.mxu0 0.0
    %345 = vmatpush1.msra.mxu0 %v120
    %346 = vmatprep.subr.mxu0 0.0
    %347 = vmatpush1.msra.mxu0 %v121
    %348 = vmatprep.subr.mxu0 0.0
    %349 = vmatpush1.msra.mxu0 %v122
    %350 = vmatprep.subr.mxu0 0.0
    %351 = vmatpush1.msra.mxu0 %v123
    %352 = vmatprep.subr.mxu0 0.0
    %353 = vmatpush1.msra.mxu0 %v124
    %354 = vmatprep.subr.mxu0 0.0
    %355 = vmatpush1.msra.mxu0 %v125
    %356 = vmatprep.subr.mxu0 0.0
    %357 = vmatpush1.msra.mxu0 %v126
    %358 = vmatprep.subr.mxu0 0.0
    %359 = vmatpush1.msra.mxu0 %v127
    %360 = vmatprep.subr.mxu0 0.0
    %361 = vmatpush1.msra.mxu0 %v128
    %362 = vmatprep.subr.mxu0 0.0
    %363 = vmatpush1.msra.mxu0 %v129
    %364 = vmatprep.subr.mxu0 0.0
    %365 = vmatpush1.msra.mxu0 %v130
    %366 = vmatprep.subr.mxu0 0.0
    %367 = vmatpush1.msra.mxu0 %v131
    %368 = vmatprep.subr.mxu0 0.0
    %369 = vmatpush1.msra.mxu0 %v132
    %370 = vmatprep.subr.mxu0 0.0
    %371 = vmatpush1.msra.mxu0 %v133
    %372 = vmatprep.subr.mxu0 0.0
    %373 = vmatpush1.msra.mxu0 %v134
    %374 = vmatprep.subr.mxu0 0.0
    %375 = vmatpush1.msra.mxu0 %v135
    %376 = vmatprep.subr.mxu0 0.0
    %377 = vmatpush1.msra.mxu0 %v136
    %378 = vmatprep.subr.mxu0 0.0
    %379 = vmatpush1.msra.mxu0 %v137
    %380 = vmatprep.mubr.f32.mxu0 %v220
    %381 = vmatmul.mubr.f32.gmra.mrb[0].mxu0 %v218
    %v382 = vpop.f32.mrb[0].mxu0
    %v383 = vadd.f32 %v313, %v382
    %v384 = vpop.f32.mrb[0].mxu0
    %385 = vdwg.mxu0
    %386 = vmatprep.subr.mxu0 0.0
    %387 = vmatpush1.msra.mxu0 %v138
    %388 = vmatprep.subr.mxu0 0.0
    %389 = vmatpush1.msra.mxu0 %v139
    %390 = vmatprep.subr.mxu0 0.0
    %391 = vmatpush1.msra.mxu0 %v140
    %392 = vmatprep.subr.mxu0 0.0
    %393 = vmatpush1.msra.mxu0 %v141
    %394 = vmatprep.subr.mxu0 0.0
    %395 = vmatpush1.msra.mxu0 %v142
    %396 = vmatprep.subr.mxu0 0.0
    %397 = vmatpush1.msra.mxu0 %v143
    %398 = vmatprep.subr.mxu0 0.0
    %399 = vmatpush1.msra.mxu0 %v144
    %400 = vmatprep.subr.mxu0 0.0
    %401 = vmatpush1.msra.mxu0 %v145
    %402 = vmatprep.subr.mxu0 0.0
    %403 = vmatpush1.msra.mxu0 %v146
    %404 = vmatprep.subr.mxu0 0.0
    %405 = vmatpush1.msra.mxu0 %v147
    %406 = vmatprep.subr.mxu0 0.0
    %407 = vmatpush1.msra.mxu0 %v148
    %408 = vmatprep.subr.mxu0 0.0
    %409 = vmatpush1.msra.mxu0 %v149
    %410 = vmatprep.subr.mxu0 0.0
    %411 = vmatpush1.msra.mxu0 %v150
    %412 = vmatprep.subr.mxu0 0.0
    %413 = vmatpush1.msra.mxu0 %v151
    %414 = vmatprep.subr.mxu0 0.0
    %415 = vmatpush1.msra.mxu0 %v152
    %416 = vmatprep.subr.mxu0 0.0
    %417 = vmatpush1.msra.mxu0 %v153
    %418 = vmatprep.subr.mxu0 0.0
    %419 = vmatpush1.msra.mxu0 %v154
    %420 = vmatprep.subr.mxu0 0.0
    %421 = vmatpush1.msra.mxu0 %v155
    %422 = vmatprep.subr.mxu0 0.0
    %423 = vmatpush1.msra.mxu0 %v156
    %424 = vmatprep.subr.mxu0 0.0
    %425 = vmatpush1.msra.mxu0 %v157
    %426 = vmatprep.subr.mxu0 0.0
    %427 = vmatpush1.msra.mxu0 %v158
    %428 = vmatprep.subr.mxu0 0.0
    %429 = vmatpush1.msra.mxu0 %v159
    %430 = vmatprep.subr.mxu0 0.0
    %431 = vmatpush1.msra.mxu0 %v160
    %432 = vmatprep.subr.mxu0 0.0
    %433 = vmatpush1.msra.mxu0 %v161
    %434 = vmatprep.subr.mxu0 0.0
    %435 = vmatpush1.msra.mxu0 %v162
    %436 = vmatprep.subr.mxu0 0.0
    %437 = vmatpush1.msra.mxu0 %v163
    %438 = vmatprep.subr.mxu0 0.0
    %439 = vmatpush1.msra.mxu0 %v164
    %440 = vmatprep.subr.mxu0 0.0
    %441 = vmatpush1.msra.mxu0 %v165
    %442 = vmatprep.subr.mxu0 0.0
    %443 = vmatpush1.msra.mxu0 %v166
    %444 = vmatprep.subr.mxu0 0.0
    %445 = vmatpush1.msra.mxu0 %v167
    %446 = vmatprep.subr.mxu0 0.0
    %447 = vmatpush1.msra.mxu0 %v168
    %448 = vmatprep.subr.mxu0 0.0
    %449 = vmatpush1.msra.mxu0 %v169
    %450 = vmatprep.mubr.f32.mxu0 %v236
    %451 = vmatmul.mubr.f32.gmra.mrb[0].mxu0 %v228
    %v452 = vpop.f32.mrb[0].mxu0
    %v453 = vadd.f32 %v383, %v452
    %v454 = vpop.f32.mrb[0].mxu0
    %455 = vdwg.mxu0
    %456 = vmatprep.subr.mxu0 0.0
    %457 = vmatpush1.msra.mxu0 %v170
    %458 = vmatprep.subr.mxu0 0.0
    %459 = vmatpush1.msra.mxu0 %v171
    %460 = vmatprep.subr.mxu0 0.0
    %461 = vmatpush1.msra.mxu0 %v172
    %462 = vmatprep.subr.mxu0 0.0
    %463 = vmatpush1.msra.mxu0 %v173
    %464 = vmatprep.subr.mxu0 0.0
    %465 = vmatpush1.msra.mxu0 %v174
    %466 = vmatprep.subr.mxu0 0.0
    %467 = vmatpush1.msra.mxu0 %v175
    %468 = vmatprep.subr.mxu0 0.0
    %469 = vmatpush1.msra.mxu0 %v176
    %470 = vmatprep.subr.mxu0 0.0
    %471 = vmatpush1.msra.mxu0 %v177
    %472 = vmatprep.subr.mxu0 0.0
    %473 = vmatpush1.msra.mxu0 %v178
    %474 = vmatprep.subr.mxu0 0.0
    %475 = vmatpush1.msra.mxu0 %v179
    %476 = vmatprep.subr.mxu0 0.0
    %477 = vmatpush1.msra.mxu0 %v180
    %478 = vmatprep.subr.mxu0 0.0
    %479 = vmatpush1.msra.mxu0 %v181
    %480 = vmatprep.subr.mxu0 0.0
    %481 = vmatpush1.msra.mxu0 %v182
    %482 = vmatprep.subr.mxu0 0.0
    %483 = vmatpush1.msra.mxu0 %v183
    %484 = vmatprep.subr.mxu0 0.0
    %485 = vmatpush1.msra.mxu0 %v184
    %486 = vmatprep.subr.mxu0 0.0
    %487 = vmatpush1.msra.mxu0 %v185
    %488 = vmatprep.subr.mxu0 0.0
    %489 = vmatpush1.msra.mxu0 %v186
    %490 = vmatprep.subr.mxu0 0.0
    %491 = vmatpush1.msra.mxu0 %v187
    %492 = vmatprep.subr.mxu0 0.0
    %493 = vmatpush1.msra.mxu0 %v188
    %494 = vmatprep.subr.mxu0 0.0
    %495 = vmatpush1.msra.mxu0 %v189
    %496 = vmatprep.subr.mxu0 0.0
    %497 = vmatpush1.msra.mxu0 %v190
    %498 = vmatprep.subr.mxu0 0.0
    %499 = vmatpush1.msra.mxu0 %v191
    %500 = vmatprep.subr.mxu0 0.0
    %501 = vmatpush1.msra.mxu0 %v192
    %502 = vmatprep.subr.mxu0 0.0
    %503 = vmatpush1.msra.mxu0 %v193
    %504 = vmatprep.subr.mxu0 0.0
    %505 = vmatpush1.msra.mxu0 %v194
    %506 = vmatprep.subr.mxu0 0.0
    %507 = vmatpush1.msra.mxu0 %v195
    %508 = vmatprep.subr.mxu0 0.0
    %509 = vmatpush1.msra.mxu0 %v196
    %510 = vmatprep.subr.mxu0 0.0
    %511 = vmatpush1.msra.mxu0 %v197
    %512 = vmatprep.subr.mxu0 0.0
    %513 = vmatpush1.msra.mxu0 %v198
    %514 = vmatprep.subr.mxu0 0.0
    %515 = vmatpush1.msra.mxu0 %v199
    %516 = vmatprep.subr.mxu0 0.0
    %517 = vmatpush1.msra.mxu0 %v200
    %518 = vmatprep.subr.mxu0 0.0
    %519 = vmatpush1.msra.mxu0 %v201
    %520 = vmatprep.mubr.f32.mxu0 %v237
    %521 = vmatmul.mubr.f32.gmra.mrb[0].mxu0 %v235
    %v522 = vpop.f32.mrb[0].mxu0
    %v523 = vadd.f32 %v453, %v522
    %v524 = vpop.f32.mrb[0].mxu0
    %525 = vdwg.mxu0
    %v526 = vld [vmem:[#allocation8 + $0x108] sm:$0xff]
    %v527 = vld [vmem:[#allocation8 + $0x110] sm:$0xff]
    %v528 = vld [vmem:[#allocation7] sm:$0xff]
    %v529 = vld [vmem:[#allocation7 + $0x8] sm:$0xff]
    %vm530 = vcmask 15360
    %v532 = vsel %vm530, %v528, 0
    %v535 = vsel %vm530, %v529, 0
    %vm537 = vcmask 1041408
    %v539 = vsel %vm537, %v523, 0
    %541 = vmatprep.subr.mxu0 0.0
    %542 = vmatpush1.msra.mxu0 %v539
    %543 = vmatprep.subr.mxu0 0.0
    %544 = vmatpush1.msra.mxu0 0.0
    %545 = vmatprep.subr.mxu0 0.0
    %546 = vmatpush1.msra.mxu0 0.0
    %547 = vmatprep.subr.mxu0 0.0
    %548 = vmatpush1.msra.mxu0 0.0
    %549 = vmatprep.subr.mxu0 0.0
    %550 = vmatpush1.msra.mxu0 0.0
    %551 = vmatprep.subr.mxu0 0.0
    %552 = vmatpush1.msra.mxu0 0.0
    %553 = vmatprep.subr.mxu0 0.0
    %554 = vmatpush1.msra.mxu0 0.0
    %555 = vmatprep.subr.mxu0 0.0
    %556 = vmatpush1.msra.mxu0 0.0
    %557 = vmatprep.subr.mxu0 0.0
    %558 = vmatpush1.msra.mxu0 0.0
    %559 = vmatprep.subr.mxu0 0.0
    %560 = vmatpush1.msra.mxu0 0.0
    %561 = vmatprep.subr.mxu0 0.0
    %562 = vmatpush1.msra.mxu0 0.0
    %563 = vmatprep.subr.mxu0 0.0
    %564 = vmatpush1.msra.mxu0 0.0
    %565 = vmatprep.subr.mxu0 0.0
    %566 = vmatpush1.msra.mxu0 0.0
    %567 = vmatprep.subr.mxu0 0.0
    %568 = vmatpush1.msra.mxu0 0.0
    %569 = vmatprep.subr.mxu0 0.0
    %570 = vmatpush1.msra.mxu0 0.0
    %571 = vmatprep.subr.mxu0 0.0
    %572 = vmatpush1.msra.mxu0 0.0
    %573 = vmatprep.subr.mxu0 0.0
    %574 = vmatpush1.msra.mxu0 0.0
    %575 = vmatprep.subr.mxu0 0.0
    %576 = vmatpush1.msra.mxu0 0.0
    %577 = vmatprep.subr.mxu0 0.0
    %578 = vmatpush1.msra.mxu0 0.0
    %579 = vmatprep.subr.mxu0 0.0
    %580 = vmatpush1.msra.mxu0 0.0
    %581 = vmatprep.subr.mxu0 0.0
    %582 = vmatpush1.msra.mxu0 0.0
    %583 = vmatprep.subr.mxu0 0.0
    %584 = vmatpush1.msra.mxu0 0.0
    %585 = vmatprep.subr.mxu0 0.0
    %586 = vmatpush1.msra.mxu0 0.0
    %587 = vmatprep.subr.mxu0 0.0
    %588 = vmatpush1.msra.mxu0 0.0
    %589 = vmatprep.subr.mxu0 0.0
    %590 = vmatpush1.msra.mxu0 0.0
    %591 = vmatprep.subr.mxu0 0.0
    %592 = vmatpush1.msra.mxu0 0.0
    %593 = vmatprep.subr.mxu0 0.0
    %594 = vmatpush1.msra.mxu0 0.0
    %595 = vmatprep.subr.mxu0 0.0
    %596 = vmatpush1.msra.mxu0 0.0
    %597 = vmatprep.subr.mxu0 0.0
    %598 = vmatpush1.msra.mxu0 0.0
    %599 = vmatprep.subr.mxu0 0.0
    %600 = vmatpush1.msra.mxu0 0.0
    %601 = vmatprep.subr.mxu0 0.0
    %602 = vmatpush1.msra.mxu0 0.0
    %603 = vmatprep.subr.mxu0 0.0
    %604 = vmatpush1.msra.mxu0 0.0
    %605 = vmatprep.mubr.f32.mxu0 0.0
    %606 = vmatmul.mubr.f32.gmra.mrb[0].mxu0 %v532
    %v607 = vpop.f32.mrb[0].mxu0
    %v608 = vadd.f32 0.0, %v607
    %v609 = vpop.f32.mrb[0].mxu0
    %610 = vmatprep.mubr.f32.mxu0 0.0
    %611 = vmatmul.mubr.f32.gmra.mrb[0].mxu0 %v535
    %v612 = vpop.f32.mrb[0].mxu0
    %v613 = vadd.f32 0.0, %v612
    %v614 = vpop.f32.mrb[0].mxu0
    %615 = vdwg.mxu0
    %v616 = vadd.f32 %v526, %v608
    %v617 = vadd.f32 %v527, %v613
    %v618 = vadd.f32 %v616, %v617
    %v619 = vrot.slane %v618, 4
    %v620 = vadd.f32 %v618, %v619
    %v621 = vrot.slane %v620, 2
    %v622 = vadd.f32 %v620, %v621
    %v623 = vrot.slane %v622, 1
    %v624 = vadd.f32 %v622, %v623
    %v625 = vmul.f32 %v624, 0.0625
    %v626 = vsub.f32 %v616, %v625
    %v627 = vsub.f32 %v617, %v625
    %v628 = vmul.f32 %v626, %v626
    %v629 = vmul.f32 %v627, %v627
    %v630 = vadd.f32 %v628, %v629
    %v631 = vrot.slane %v630, 4
    %v632 = vadd.f32 %v630, %v631
    %v633 = vrot.slane %v632, 2
    %v634 = vadd.f32 %v632, %v633
    %v635 = vrot.slane %v634, 1
    %v636 = vadd.f32 %v634, %v635
    %v637 = vmul.f32 %v636, 0.0625
    %v638 = vadd.f32 %v637, 1e-05
    %v639 = vrsqrt.pop %v638
    %v640 = vmul.f32 %v71, %v639
    %v641 = vlaneseq
    %v642 = vshrl.u32 %v641, 7
    %v643 = vsub.s32 0, %v642
    %v644 = vrot.slane %v640, %v643
    %v645 = vmul.f32 %v626, %v644
    %v646 = vmul.f32 %v627, %v644
    %v647 = vlaneseq
    %v648 = vshrl.u32 %v647, 7
    %v649 = vsub.s32 1, %v648
    %v650 = vrot.slane %v71, %v649
    %v651 = vadd.f32 %v645, %v650
    %v652 = vadd.f32 %v646, %v650
    %vm653 = vcmp.gt.f32.partialorder %v651, 0.0
    %vm654 = vcmp.gt.f32.partialorder %v652, 0.0
    %v655 = vmin.f32 %v651, 0.0
    %v656 = vmin.f32 %v652, 0.0
    %v657 = vmul.f32 %v655, 1.442695
    %v658 = vpow.pop %v657
    %v659 = vmul.f32 %v656, 1.442695
    %v660 = vpow.pop %v659
    %v661 = vsub.f32 %v658, 1.0
    %v662 = vsub.f32 %v660, 1.0
    %v663 = vsel %vm653, %v651, %v661
    %v664 = vsel %vm654, %v652, %v662
    %v665 = vld [vmem:[#allocation8] sm:$0xff]
    %v666 = vld [vmem:[#allocation8 + $0x8] sm:$0xff]
    %v667 = vld [vmem:[#allocation8 + $0x10] sm:$0xff]
    %v668 = vld [vmem:[#allocation8 + $0x18] sm:$0xff]
    %v669 = vld [vmem:[#allocation8 + $0x20] sm:$0xff]
    %v670 = vld [vmem:[#allocation8 + $0x28] sm:$0xff]
    %v671 = vld [vmem:[#allocation8 + $0x30] sm:$0xff]
    %v672 = vld [vmem:[#allocation8 + $0x38] sm:$0xff]
    %v673 = vld [vmem:[#allocation8 + $0x40] sm:$0xff]
    %v674 = vld [vmem:[#allocation8 + $0x48] sm:$0xff]
    %v675 = vld [vmem:[#allocation8 + $0x50] sm:$0xff]
    %v676 = vld [vmem:[#allocation8 + $0x58] sm:$0xff]
    %v677 = vld [vmem:[#allocation8 + $0x60] sm:$0xff]
    %v678 = vld [vmem:[#allocation8 + $0x68] sm:$0xff]
    %v679 = vld [vmem:[#allocation8 + $0x70] sm:$0xff]
    %v680 = vld [vmem:[#allocation8 + $0x78] sm:$0xff]
    %681 = vmatprep.subr.mxu0 0.0
    %682 = vmatpush1.msra.mxu0 %v665
    %683 = vmatprep.subr.mxu0 0.0
    %684 = vmatpush1.msra.mxu0 %v666
    %685 = vmatprep.subr.mxu0 0.0
    %686 = vmatpush1.msra.mxu0 %v667
    %687 = vmatprep.subr.mxu0 0.0
    %688 = vmatpush1.msra.mxu0 %v668
    %689 = vmatprep.subr.mxu0 0.0
    %690 = vmatpush1.msra.mxu0 %v669
    %691 = vmatprep.subr.mxu0 0.0
    %692 = vmatpush1.msra.mxu0 %v670
    %693 = vmatprep.subr.mxu0 0.0
    %694 = vmatpush1.msra.mxu0 %v671
    %695 = vmatprep.subr.mxu0 0.0
    %696 = vmatpush1.msra.mxu0 %v672
    %697 = vmatprep.subr.mxu0 0.0
    %698 = vmatpush1.msra.mxu0 %v673
    %699 = vmatprep.subr.mxu0 0.0
    %700 = vmatpush1.msra.mxu0 %v674
    %701 = vmatprep.subr.mxu0 0.0
    %702 = vmatpush1.msra.mxu0 %v675
    %703 = vmatprep.subr.mxu0 0.0
    %704 = vmatpush1.msra.mxu0 %v676
    %705 = vmatprep.subr.mxu0 0.0
    %706 = vmatpush1.msra.mxu0 %v677
    %707 = vmatprep.subr.mxu0 0.0
    %708 = vmatpush1.msra.mxu0 %v678
    %709 = vmatprep.subr.mxu0 0.0
    %710 = vmatpush1.msra.mxu0 %v679
    %711 = vmatprep.subr.mxu0 0.0
    %712 = vmatpush1.msra.mxu0 %v680
    %713 = vmatprep.subr.mxu0 0.0
    %714 = vmatpush1.msra.mxu0 0.0
    %715 = vmatprep.subr.mxu0 0.0
    %716 = vmatpush1.msra.mxu0 0.0
    %717 = vmatprep.subr.mxu0 0.0
    %718 = vmatpush1.msra.mxu0 0.0
    %719 = vmatprep.subr.mxu0 0.0
    %720 = vmatpush1.msra.mxu0 0.0
    %721 = vmatprep.subr.mxu0 0.0
    %722 = vmatpush1.msra.mxu0 0.0
    %723 = vmatprep.subr.mxu0 0.0
    %724 = vmatpush1.msra.mxu0 0.0
    %725 = vmatprep.subr.mxu0 0.0
    %726 = vmatpush1.msra.mxu0 0.0
    %727 = vmatprep.subr.mxu0 0.0
    %728 = vmatpush1.msra.mxu0 0.0
    %729 = vmatprep.subr.mxu0 0.0
    %730 = vmatpush1.msra.mxu0 0.0
    %731 = vmatprep.subr.mxu0 0.0
    %732 = vmatpush1.msra.mxu0 0.0
    %733 = vmatprep.subr.mxu0 0.0
    %734 = vmatpush1.msra.mxu0 0.0
    %735 = vmatprep.subr.mxu0 0.0
    %736 = vmatpush1.msra.mxu0 0.0
    %737 = vmatprep.subr.mxu0 0.0
    %738 = vmatpush1.msra.mxu0 0.0
    %739 = vmatprep.subr.mxu0 0.0
    %740 = vmatpush1.msra.mxu0 0.0
    %741 = vmatprep.subr.mxu0 0.0
    %742 = vmatpush1.msra.mxu0 0.0
    %743 = vmatprep.subr.mxu0 0.0
    %744 = vmatpush1.msra.mxu0 0.0
    %745 = vmatprep.mubr.f32.mxu0 0.0
    %746 = vmatmul.mubr.f32.gmra.mrb[0].mxu0 %v663
    %v747 = vpop.f32.mrb[0].mxu0
    %v748 = vadd.f32 0.0, %v747
    %v749 = vpop.f32.mrb[0].mxu0
    %750 = vmatprep.mubr.f32.mxu0 0.0
    %751 = vmatmul.mubr.f32.gmra.mrb[0].mxu0 %v664
    %v752 = vpop.f32.mrb[0].mxu0
    %v753 = vadd.f32 0.0, %v752
    %v754 = vpop.f32.mrb[0].mxu0
    %755 = vdwg.mxu0
    %756 = vrot.lane.b32.xlu0 %v528, 126
    %v757 = vpop.permute.xlu0 %756
    %758 = vrot.lane.b32.xlu0 %v529, 126
    %v759 = vpop.permute.xlu0 %758
    %vm760 = vcmask 130048
    %v761 = vsel %vm760, %v757, 0
    %v763 = vsel %vm760, %v759, 0
    %765 = vmatprep.subr.mxu0 0.0
    %766 = vmatpush1.msra.mxu0 %v748
    %767 = vmatprep.subr.mxu0 0.0
    %768 = vmatpush1.msra.mxu0 %v753
    %769 = vmatprep.subr.mxu0 0.0
    %770 = vmatpush1.msra.mxu0 0.0
    %771 = vmatprep.subr.mxu0 0.0
    %772 = vmatpush1.msra.mxu0 0.0
    %773 = vmatprep.subr.mxu0 0.0
    %774 = vmatpush1.msra.mxu0 0.0
    %775 = vmatprep.subr.mxu0 0.0
    %776 = vmatpush1.msra.mxu0 0.0
    %777 = vmatprep.subr.mxu0 0.0
    %778 = vmatpush1.msra.mxu0 0.0
    %779 = vmatprep.subr.mxu0 0.0
    %780 = vmatpush1.msra.mxu0 0.0
    %781 = vmatprep.subr.mxu0 0.0
    %782 = vmatpush1.msra.mxu0 0.0
    %783 = vmatprep.subr.mxu0 0.0
    %784 = vmatpush1.msra.mxu0 0.0
    %785 = vmatprep.subr.mxu0 0.0
    %786 = vmatpush1.msra.mxu0 0.0
    %787 = vmatprep.subr.mxu0 0.0
    %788 = vmatpush1.msra.mxu0 0.0
    %789 = vmatprep.subr.mxu0 0.0
    %790 = vmatpush1.msra.mxu0 0.0
    %791 = vmatprep.subr.mxu0 0.0
    %792 = vmatpush1.msra.mxu0 0.0
    %793 = vmatprep.subr.mxu0 0.0
    %794 = vmatpush1.msra.mxu0 0.0
    %795 = vmatprep.subr.mxu0 0.0
    %796 = vmatpush1.msra.mxu0 0.0
    %797 = vmatprep.subr.mxu0 0.0
    %798 = vmatpush1.msra.mxu0 0.0
    %799 = vmatprep.subr.mxu0 0.0
    %800 = vmatpush1.msra.mxu0 0.0
    %801 = vmatprep.subr.mxu0 0.0
    %802 = vmatpush1.msra.mxu0 0.0
    %803 = vmatprep.subr.mxu0 0.0
    %804 = vmatpush1.msra.mxu0 0.0
    %805 = vmatprep.subr.mxu0 0.0
    %806 = vmatpush1.msra.mxu0 0.0
    %807 = vmatprep.subr.mxu0 0.0
    %808 = vmatpush1.msra.mxu0 0.0
    %809 = vmatprep.subr.mxu0 0.0
    %810 = vmatpush1.msra.mxu0 0.0
    %811 = vmatprep.subr.mxu0 0.0
    %812 = vmatpush1.msra.mxu0 0.0
    %813 = vmatprep.subr.mxu0 0.0
    %814 = vmatpush1.msra.mxu0 0.0
    %815 = vmatprep.subr.mxu0 0.0
    %816 = vmatpush1.msra.mxu0 0.0
    %817 = vmatprep.subr.mxu0 0.0
    %818 = vmatpush1.msra.mxu0 0.0
    %819 = vmatprep.subr.mxu0 0.0
    %820 = vmatpush1.msra.mxu0 0.0
    %821 = vmatprep.subr.mxu0 0.0
    %822 = vmatpush1.msra.mxu0 0.0
    %823 = vmatprep.subr.mxu0 0.0
    %824 = vmatpush1.msra.mxu0 0.0
    %825 = vmatprep.subr.mxu0 0.0
    %826 = vmatpush1.msra.mxu0 0.0
    %827 = vmatprep.subr.mxu0 0.0
    %828 = vmatpush1.msra.mxu0 0.0
    %829 = vmatprep.mubr.f32.mxu0 0.0
    %830 = vmatmul.mubr.f32.gmra.mrb[0].mxu0 %v761
    %v831 = vpop.f32.mrb[0].mxu0
    %v832 = vadd.f32 0.0, %v831
    %v833 = vpop.f32.mrb[0].mxu0
    %834 = vmatprep.mubr.f32.mxu0 0.0
    %835 = vmatmul.mubr.f32.gmra.mrb[0].mxu0 %v763
    %v836 = vpop.f32.mrb[0].mxu0
    %v837 = vadd.f32 0.0, %v836
    %v838 = vpop.f32.mrb[0].mxu0
    %839 = vdwg.mxu0
    %v840 = vadd.f32 %v832, %v837
    %v841 = vrot.slane %v840, 4
    %v842 = vadd.f32 %v840, %v841
    %v843 = vrot.slane %v842, 2
    %v844 = vadd.f32 %v842, %v843
    %v845 = vrot.slane %v844, 1
    %v846 = vadd.f32 %v844, %v845
    %v847 = vmul.f32 %v846, 0.0625
    %v848 = vsub.f32 %v832, %v847
    %v849 = vsub.f32 %v837, %v847
    %v850 = vmul.f32 %v848, %v848
    %v851 = vmul.f32 %v849, %v849
    %v852 = vadd.f32 %v850, %v851
    %v853 = vrot.slane %v852, 4
    %v854 = vadd.f32 %v852, %v853
    %v855 = vrot.slane %v854, 2
    %v856 = vadd.f32 %v854, %v855
    %v857 = vrot.slane %v856, 1
    %v858 = vadd.f32 %v856, %v857
    %v859 = vmul.f32 %v858, 0.0625
    %v860 = vadd.f32 %v859, 1e-05
    %v861 = vrsqrt.pop %v860
    %v862 = vmul.f32 %v71, %v861
    %v863 = vlaneseq
    %v864 = vshrl.u32 %v863, 7
    %v865 = vsub.s32 2, %v864
    %v866 = vrot.slane %v862, %v865
    %v867 = vmul.f32 %v848, %v866
    %v868 = vmul.f32 %v849, %v866
    %v869 = vlaneseq
    %v870 = vshrl.u32 %v869, 7
    %v871 = vsub.s32 3, %v870
    %v872 = vrot.slane %v71, %v871
    %v873 = vadd.f32 %v867, %v872
    %v874 = vadd.f32 %v868, %v872
    %vm875 = vcmp.gt.f32.partialorder %v873, 0.0
    %vm876 = vcmp.gt.f32.partialorder %v874, 0.0
    %v877 = vmin.f32 %v873, 0.0
    %v878 = vmin.f32 %v874, 0.0
    %v879 = vmul.f32 %v877, 1.442695
    %v880 = vpow.pop %v879
    %v881 = vmul.f32 %v878, 1.442695
    %v882 = vpow.pop %v881
    %v883 = vsub.f32 %v880, 1.0
    %v884 = vsub.f32 %v882, 1.0
    %v885 = vsel %vm875, %v873, %v883
    %v886 = vsel %vm876, %v874, %v884
    %v887 = vld [vmem:[#allocation8 + $0x80] sm:$0xff]
    %v888 = vld [vmem:[#allocation8 + $0x88] sm:$0xff]
    %v889 = vld [vmem:[#allocation8 + $0x90] sm:$0xff]
    %v890 = vld [vmem:[#allocation8 + $0x98] sm:$0xff]
    %v891 = vld [vmem:[#allocation8 + $0xa0] sm:$0xff]
    %v892 = vld [vmem:[#allocation8 + $0xa8] sm:$0xff]
    %v893 = vld [vmem:[#allocation8 + $0xb0] sm:$0xff]
    %v894 = vld [vmem:[#allocation8 + $0xb8] sm:$0xff]
    %v895 = vld [vmem:[#allocation8 + $0xc0] sm:$0xff]
    %v896 = vld [vmem:[#allocation8 + $0xc8] sm:$0xff]
    %v897 = vld [vmem:[#allocation8 + $0xd0] sm:$0xff]
    %v898 = vld [vmem:[#allocation8 + $0xd8] sm:$0xff]
    %v899 = vld [vmem:[#allocation8 + $0xe0] sm:$0xff]
    %v900 = vld [vmem:[#allocation8 + $0xe8] sm:$0xff]
    %v901 = vld [vmem:[#allocation8 + $0xf0] sm:$0xff]
    %v902 = vld [vmem:[#allocation8 + $0xf8] sm:$0xff]
    %903 = vmatprep.subr.mxu0 0.0
    %904 = vmatpush1.msra.mxu0 %v887
    %905 = vmatprep.subr.mxu0 0.0
    %906 = vmatpush1.msra.mxu0 %v888
    %907 = vmatprep.subr.mxu0 0.0
    %908 = vmatpush1.msra.mxu0 %v889
    %909 = vmatprep.subr.mxu0 0.0
    %910 = vmatpush1.msra.mxu0 %v890
    %911 = vmatprep.subr.mxu0 0.0
    %912 = vmatpush1.msra.mxu0 %v891
    %913 = vmatprep.subr.mxu0 0.0
    %914 = vmatpush1.msra.mxu0 %v892
    %915 = vmatprep.subr.mxu0 0.0
    %916 = vmatpush1.msra.mxu0 %v893
    %917 = vmatprep.subr.mxu0 0.0
    %918 = vmatpush1.msra.mxu0 %v894
    %919 = vmatprep.subr.mxu0 0.0
    %920 = vmatpush1.msra.mxu0 %v895
    %921 = vmatprep.subr.mxu0 0.0
    %922 = vmatpush1.msra.mxu0 %v896
    %923 = vmatprep.subr.mxu0 0.0
    %924 = vmatpush1.msra.mxu0 %v897
    %925 = vmatprep.subr.mxu0 0.0
    %926 = vmatpush1.msra.mxu0 %v898
    %927 = vmatprep.subr.mxu0 0.0
    %928 = vmatpush1.msra.mxu0 %v899
    %929 = vmatprep.subr.mxu0 0.0
    %930 = vmatpush1.msra.mxu0 %v900
    %931 = vmatprep.subr.mxu0 0.0
    %932 = vmatpush1.msra.mxu0 %v901
    %933 = vmatprep.subr.mxu0 0.0
    %934 = vmatpush1.msra.mxu0 %v902
    %935 = vmatprep.subr.mxu0 0.0
    %936 = vmatpush1.msra.mxu0 0.0
    %937 = vmatprep.subr.mxu0 0.0
    %938 = vmatpush1.msra.mxu0 0.0
    %939 = vmatprep.subr.mxu0 0.0
    %940 = vmatpush1.msra.mxu0 0.0
    %941 = vmatprep.subr.mxu0 0.0
    %942 = vmatpush1.msra.mxu0 0.0
    %943 = vmatprep.subr.mxu0 0.0
    %944 = vmatpush1.msra.mxu0 0.0
    %945 = vmatprep.subr.mxu0 0.0
    %946 = vmatpush1.msra.mxu0 0.0
    %947 = vmatprep.subr.mxu0 0.0
    %948 = vmatpush1.msra.mxu0 0.0
    %949 = vmatprep.subr.mxu0 0.0
    %950 = vmatpush1.msra.mxu0 0.0
    %951 = vmatprep.subr.mxu0 0.0
    %952 = vmatpush1.msra.mxu0 0.0
    %953 = vmatprep.subr.mxu0 0.0
    %954 = vmatpush1.msra.mxu0 0.0
    %955 = vmatprep.subr.mxu0 0.0
    %956 = vmatpush1.msra.mxu0 0.0
    %957 = vmatprep.subr.mxu0 0.0
    %958 = vmatpush1.msra.mxu0 0.0
    %959 = vmatprep.subr.mxu0 0.0
    %960 = vmatpush1.msra.mxu0 0.0
    %961 = vmatprep.subr.mxu0 0.0
    %962 = vmatpush1.msra.mxu0 0.0
    %963 = vmatprep.subr.mxu0 0.0
    %964 = vmatpush1.msra.mxu0 0.0
    %965 = vmatprep.subr.mxu0 0.0
    %966 = vmatpush1.msra.mxu0 0.0
    %967 = vmatprep.mubr.f32.mxu0 0.0
    %968 = vmatmul.mubr.f32.gmra.mrb[0].mxu0 %v885
    %v969 = vpop.f32.mrb[0].mxu0
    %v970 = vadd.f32 0.0, %v969
    %v971 = vpop.f32.mrb[0].mxu0
    %972 = vmatprep.mubr.f32.mxu0 0.0
    %973 = vmatmul.mubr.f32.gmra.mrb[0].mxu0 %v886
    %v974 = vpop.f32.mrb[0].mxu0
    %v975 = vadd.f32 0.0, %v974
    %v976 = vpop.f32.mrb[0].mxu0
    %977 = vdwg.mxu0
    %978 = vmatprep.subr.mxu0 0.0
    %979 = vmatpush1.msra.mxu0 %v970
    %980 = vmatprep.subr.mxu0 0.0
    %981 = vmatpush1.msra.mxu0 %v975
    %982 = vmatprep.subr.mxu0 0.0
    %983 = vmatpush1.msra.mxu0 0.0
    %984 = vmatprep.subr.mxu0 0.0
    %985 = vmatpush1.msra.mxu0 0.0
    %986 = vmatprep.subr.mxu0 0.0
    %987 = vmatpush1.msra.mxu0 0.0
    %988 = vmatprep.subr.mxu0 0.0
    %989 = vmatpush1.msra.mxu0 0.0
    %990 = vmatprep.subr.mxu0 0.0
    %991 = vmatpush1.msra.mxu0 0.0
    %992 = vmatprep.subr.mxu0 0.0
    %993 = vmatpush1.msra.mxu0 0.0
    %994 = vmatprep.subr.mxu0 0.0
    %995 = vmatpush1.msra.mxu0 0.0
    %996 = vmatprep.subr.mxu0 0.0
    %997 = vmatpush1.msra.mxu0 0.0
    %998 = vmatprep.subr.mxu0 0.0
    %999 = vmatpush1.msra.mxu0 0.0
    %1000 = vmatprep.subr.mxu0 0.0
    %1001 = vmatpush1.msra.mxu0 0.0
    %1002 = vmatprep.subr.mxu0 0.0
    %1003 = vmatpush1.msra.mxu0 0.0
    %1004 = vmatprep.subr.mxu0 0.0
    %1005 = vmatpush1.msra.mxu0 0.0
    %1006 = vmatprep.subr.mxu0 0.0
    %1007 = vmatpush1.msra.mxu0 0.0
    %1008 = vmatprep.subr.mxu0 0.0
    %1009 = vmatpush1.msra.mxu0 0.0
    %1010 = vmatprep.subr.mxu0 0.0
    %1011 = vmatpush1.msra.mxu0 0.0
    %1012 = vmatprep.subr.mxu0 0.0
    %1013 = vmatpush1.msra.mxu0 0.0
    %1014 = vmatprep.subr.mxu0 0.0
    %1015 = vmatpush1.msra.mxu0 0.0
    %1016 = vmatprep.subr.mxu0 0.0
    %1017 = vmatpush1.msra.mxu0 0.0
    %1018 = vmatprep.subr.mxu0 0.0
    %1019 = vmatpush1.msra.mxu0 0.0
    %1020 = vmatprep.subr.mxu0 0.0
    %1021 = vmatpush1.msra.mxu0 0.0
    %1022 = vmatprep.subr.mxu0 0.0
    %1023 = vmatpush1.msra.mxu0 0.0
    %1024 = vmatprep.subr.mxu0 0.0
    %1025 = vmatpush1.msra.mxu0 0.0
    %1026 = vmatprep.subr.mxu0 0.0
    %1027 = vmatpush1.msra.mxu0 0.0
    %1028 = vmatprep.subr.mxu0 0.0
    %1029 = vmatpush1.msra.mxu0 0.0
    %1030 = vmatprep.subr.mxu0 0.0
    %1031 = vmatpush1.msra.mxu0 0.0
    %1032 = vmatprep.subr.mxu0 0.0
    %1033 = vmatpush1.msra.mxu0 0.0
    %1034 = vmatprep.subr.mxu0 0.0
    %1035 = vmatpush1.msra.mxu0 0.0
    %1036 = vmatprep.subr.mxu0 0.0
    %1037 = vmatpush1.msra.mxu0 0.0
    %1038 = vmatprep.subr.mxu0 0.0
    %1039 = vmatpush1.msra.mxu0 0.0
    %1040 = vmatprep.subr.mxu0 0.0
    %1041 = vmatpush1.msra.mxu0 0.0
    %1042 = vmatprep.mubr.f32.mxu0 0.0
    %1043 = vmatmul.mubr.f32.gmra.mrb[0].mxu0 %v761
    %v1044 = vpop.f32.mrb[0].mxu0
    %v1045 = vadd.f32 0.0, %v1044
    %v1046 = vpop.f32.mrb[0].mxu0
    %1047 = vmatprep.mubr.f32.mxu0 0.0
    %1048 = vmatmul.mubr.f32.gmra.mrb[0].mxu0 %v763
    %v1049 = vpop.f32.mrb[0].mxu0
    %v1050 = vadd.f32 0.0, %v1049
    %v1051 = vpop.f32.mrb[0].mxu0
    %1052 = vdwg.mxu0
    %v1053 = vadd.f32 %v1045, %v1050
    %v1054 = vrot.slane %v1053, 4
    %v1055 = vadd.f32 %v1053, %v1054
    %v1056 = vrot.slane %v1055, 2
    %v1057 = vadd.f32 %v1055, %v1056
    %v1058 = vrot.slane %v1057, 1
    %v1059 = vadd.f32 %v1057, %v1058
    %v1060 = vmul.f32 %v1059, 0.0625
    %v1061 = vsub.f32 %v1045, %v1060
    %v1062 = vsub.f32 %v1050, %v1060
    %v1063 = vmul.f32 %v1061, %v1061
    %v1064 = vmul.f32 %v1062, %v1062
    %v1065 = vadd.f32 %v1063, %v1064
    %v1066 = vrot.slane %v1065, 4
    %v1067 = vadd.f32 %v1065, %v1066
    %v1068 = vrot.slane %v1067, 2
    %v1069 = vadd.f32 %v1067, %v1068
    %v1070 = vrot.slane %v1069, 1
    %v1071 = vadd.f32 %v1069, %v1070
    %v1072 = vmul.f32 %v1071, 0.0625
    %v1073 = vadd.f32 %v1072, 1e-05
    %v1074 = vrsqrt.pop %v1073
    %v1075 = vmul.f32 %v71, %v1074
    %v1076 = vlaneseq
    %v1077 = vshrl.u32 %v1076, 7
    %v1078 = vsub.s32 4, %v1077
    %v1079 = vrot.slane %v1075, %v1078
    %v1080 = vmul.f32 %v1061, %v1079
    %v1081 = vmul.f32 %v1062, %v1079
    %v1082 = vlaneseq
    %v1083 = vshrl.u32 %v1082, 7
    %v1084 = vsub.s32 5, %v1083
    %v1085 = vrot.slane %v71, %v1084
    %v1086 = vadd.f32 %v1080, %v1085
    %v1087 = vadd.f32 %v1081, %v1085
    %vm1088 = vcmp.gt.f32.partialorder %v1086, 0.0
    %vm1089 = vcmp.gt.f32.partialorder %v1087, 0.0
    %v1090 = vmin.f32 %v1086, 0.0
    %v1091 = vmin.f32 %v1087, 0.0
    %v1092 = vmul.f32 %v1090, 1.442695
    %v1093 = vpow.pop %v1092
    %v1094 = vmul.f32 %v1091, 1.442695
    %v1095 = vpow.pop %v1094
    %v1096 = vsub.f32 %v1093, 1.0
    %v1097 = vsub.f32 %v1095, 1.0
    %v1098 = vsel %vm1088, %v1086, %v1096
    %v1099 = vsel %vm1089, %v1087, %v1097
    %1100 = vst [vmem:[#allocation10] sm:$0xff] %v1098
    %1101 = vst [vmem:[#allocation10 + $0x8] sm:$0xff] %v1099
    // Predicated region
    $region34: #{knowledge_gcn_forward.1} parent=1 // pred_check
      _
    $region35: #{knowledge_gcn_forward.1} parent=1 // pred_check_branch
      %1103 = sbr.rel (0) target = $region37
    $region36: #{knowledge_gcn_forward.1} parent=1 // pred_region
      %s1105 = ssub.s32 256, 256
      %1106 = vsyncadd [#allocation4], %s1105
      %s1107 = sshll.u32 [#allocation10], 4
      %s1108 = int_to_ptr.vmem [resolvable:$true] %s1107
      %1113 = dma.vmem_to_hbm [thread:$0]  %s1108, 256, %s4, [#allocation4], 128, 128, 8
    $region37: #{knowledge_gcn_forward.1} parent=1 // pred_fallthru
      _
    // Predicated region
    $region38: #{knowledge_gcn_forward.1} parent=1 // pred_check
      _
    $region39: #{knowledge_gcn_forward.1} parent=1 // pred_check_branch
      %1115 = sbr.rel (0) target = $region41
    $region40: #{knowledge_gcn_forward.1} parent=1 // pred_region
      %1116 = dma.done [#allocation4], 256
    $region41: #{knowledge_gcn_forward.1} parent=1 // pred_fallthru
      _
    %1117 = vsyncpa [#allocation3], 1
    %1118 = vsyncpa [#allocation6], 1
    %1119 = vsyncpa [#allocation9], 1
    %1120 = vsyncpa [#allocation4], 1

</llo_original>
